<compile_context>
chip_gen: v5e
topology: v5e:2x2
jax: 0.10.0
libtpu: 0.0.40
codegen_flags: <defaults>
</compile_context>

<pallas_src>
import functools

import jax
import jax.numpy as jnp
import numpy as np
from jax.experimental import pallas as pl
from jax.experimental.pallas import tpu as pltpu


def _relu_conv_bn_kernel(x_ref, w_ref, b_ref, o_ref, *, offsets, L_pad, N,
                         compute_dtype):
    # x_ref: (N, Cin_pad, Lx_pad)      zero-padded flattened images (f32)
    # w_ref: (Cout, KH*KW*Cin_pad)     BN-scale-folded weights (compute_dtype)
    # b_ref: (Cout, 1)                 folded BN bias (f32)
    # o_ref: (N, Cout, L_pad)          full-width correlation rows, lane-dense
    # ReLU + single early cast over the whole block (pad is 0, stays 0).
    x_all = jnp.maximum(x_ref[...], 0.0).astype(compute_dtype)

    # im2col: per image, each tap is a contiguous lane-offset slice of the
    # flat image; taps stack along the contraction axis (aligned: Cin_pad % 8
    # == 0, L_pad % 128 == 0); images stack along the lane axis.
    per_image = []
    for n in range(N):                                    # static unroll
        x = x_all[n]                                      # (Cin_pad, Lx_pad)
        taps = [x[:, off:off + L_pad] for off in offsets]  # (Cin_pad, L_pad)
        per_image.append(taps[0] if len(taps) == 1
                         else jnp.concatenate(taps, axis=0))
    patches = (per_image[0] if N == 1
               else jnp.concatenate(per_image, axis=1))   # (K, N*L_pad)

    # Single MXU matmul over the whole batch, lane-dense output.
    y = jnp.dot(w_ref[...], patches, preferred_element_type=jnp.float32)
    y = y + b_ref[...]                                    # folded BN bias

    for n in range(N):                                    # aligned full tiles
        o_ref[n] = y[:, n * L_pad:(n + 1) * L_pad].astype(o_ref.dtype)


def relu_conv_bn(x_nchw, w_oihw, gamma, beta, running_mean, running_var,
                 *, stride=1, padding=1, dilation=1, eps=1e-5,
                 compute_dtype=jnp.bfloat16):
    N, Cin, H, W = x_nchw.shape
    Cout, _, KH, KW = w_oihw.shape
    s, d, p = stride, dilation, padding

    Hp, Wp = H + 2 * p, W + 2 * p
    Ho = (Hp - d * (KH - 1) - 1) // s + 1
    Wo = (Wp - d * (KW - 1) - 1) // s + 1

    # ---- alignment / padding bookkeeping ----
    Cin_pad = max(8, ((Cin + 7) // 8) * 8)          # sublane-aligned taps
    rows = (Ho - 1) * s + 1                         # dense correlation rows
    L = rows * Wp                                   # valid flattened width
    L_pad = ((L + 127) // 128) * 128                # lane-dense output width
    offsets = tuple(kh * d * Wp + kw * d
                    for kh in range(KH) for kw in range(KW))
    off_max = offsets[-1]
    Lx_pad = ((max(off_max + L_pad, Hp * Wp) + 127) // 128) * 128
    Ktot = KH * KW * Cin_pad

    # ---- BN (eval) folding: scale -> weights, bias separate (plain JAX) ----
    inv_std = 1.0 / jnp.sqrt(running_var.astype(jnp.float32) + eps)
    scale = gamma.astype(jnp.float32) * inv_std                      # (Cout,)
    bias = (beta.astype(jnp.float32) - running_mean.astype(jnp.float32) * scale
            ).reshape(Cout, 1)
    w_scaled = w_oihw.astype(jnp.float32) * scale[:, None, None, None]
    w_scaled = jnp.pad(w_scaled, ((0, 0), (0, Cin_pad - Cin), (0, 0), (0, 0)))
    # w_flat[o, (kh*KW+kw)*Cin_pad + c] = w[o, c, kh, kw] * scale[o]
    w_flat = jnp.transpose(w_scaled, (0, 2, 3, 1)).reshape(Cout, Ktot)
    w_flat = w_flat.astype(compute_dtype)

    # ---- flatten + pad input (stays NCHW; no transpose) ----
    x_pad = jnp.pad(x_nchw, ((0, 0), (0, Cin_pad - Cin), (p, p), (p, p)))
    x_flat = x_pad.reshape(N, Cin_pad, Hp * Wp)
    x_flat = jnp.pad(x_flat, ((0, 0), (0, 0), (0, Lx_pad - Hp * Wp)))

    kernel = functools.partial(_relu_conv_bn_kernel, offsets=offsets,
                               L_pad=L_pad, N=N, compute_dtype=compute_dtype)

    y_full = pl.pallas_call(
        kernel,
        out_shape=jax.ShapeDtypeStruct((N, Cout, L_pad), x_nchw.dtype),
        grid_spec=pltpu.PrefetchScalarGridSpec(
            num_scalar_prefetch=0,
            grid=(1,),                                  # whole batch, 1 step
            in_specs=[
                pl.BlockSpec((N, Cin_pad, Lx_pad), lambda i: (0, 0, 0)),
                pl.BlockSpec((Cout, Ktot), lambda i: (0, 0)),
                pl.BlockSpec((Cout, 1), lambda i: (0, 0)),
            ],
            out_specs=pl.BlockSpec((N, Cout, L_pad), lambda i: (0, 0, 0)),
        ),
        compiler_params=pltpu.CompilerParams(
            dimension_semantics=("arbitrary",)),
    )(x_flat, w_flat, bias)

    # Extract valid output positions (already NCHW layout; tiny slice).
    y4 = y_full[:, :, :L].reshape(N, Cout, rows, Wp)
    return y4[:, :, ::s, : (Wo - 1) * s + 1 : s]          # (N, Cout, Ho, Wo)


def _reference(x_nchw, w_oihw, gamma, beta, running_mean, running_var,
               *, stride, padding, dilation, eps=1e-5):
    """Pure-JAX reference matching PyTorch ReLU -> Conv2d -> BN(eval)."""
    xr = jnp.maximum(x_nchw, 0.0)
    y = jax.lax.conv_general_dilated(
        xr, w_oihw,
        window_strides=(stride, stride),
        padding=[(padding, padding), (padding, padding)],
        rhs_dilation=(dilation, dilation),
        dimension_numbers=("NCHW", "OIHW", "NCHW"),
    )
    sc = (gamma / jnp.sqrt(running_var + eps)).reshape(1, -1, 1, 1)
    b = (beta - running_mean * gamma / jnp.sqrt(running_var + eps)
         ).reshape(1, -1, 1, 1)
    return y * sc + b


if __name__ == "__main__":
    # Module config: ReLUConvBN(C_in=4, C_out=8, kernel_size=3, stride=1,
    #                           padding=1, dilation=1)
    C_in, C_out, K, stride, padding, dilation = 4, 8, 3, 1, 1, 1
    N, H, W = 2, 16, 16

    key = jax.random.PRNGKey(0)
    kx, kw, kg, kb, km, kv = jax.random.split(key, 6)

    x = jax.random.normal(kx, (N, C_in, H, W), jnp.float32)
    w = jax.random.normal(kw, (C_out, C_in, K, K), jnp.float32) * 0.1
    gamma = 1.0 + 0.1 * jax.random.normal(kg, (C_out,), jnp.float32)
    beta = 0.1 * jax.random.normal(kb, (C_out,), jnp.float32)
    running_mean = 0.1 * jax.random.normal(km, (C_out,), jnp.float32)
    running_var = jnp.abs(1.0 + 0.1 * jax.random.normal(kv, (C_out,), jnp.float32))

    ref = _reference(x, w, gamma, beta, running_mean, running_var,
                     stride=stride, padding=padding, dilation=dilation)

    # Exact (f32) path.
    out_f32 = relu_conv_bn(x, w, gamma, beta, running_mean, running_var,
                           stride=stride, padding=padding, dilation=dilation,
                           compute_dtype=jnp.float32)
    out_f32 = jax.block_until_ready(out_f32)
    np.testing.assert_allclose(np.asarray(out_f32), np.asarray(ref),
                               rtol=1e-4, atol=1e-4)

    # bf16-MXU path (default; v5e/v6e/v7x-friendly) -- looser tolerance.
    out_bf16 = relu_conv_bn(x, w, gamma, beta, running_mean, running_var,
                            stride=stride, padding=padding, dilation=dilation,
                            compute_dtype=jnp.bfloat16)
    out_bf16 = jax.block_until_ready(out_bf16)
    np.testing.assert_allclose(np.asarray(out_bf16), np.asarray(ref),
                               rtol=2e-2, atol=2e-2)

    print("KERNEL_OK")
</pallas_src>

<mosaic_0001>
module attributes {stable_mosaic.version = 11 : i64} {
  func.func @_relu_conv_bn_kernel(%arg0: i32, %arg1: memref<2x8x512xf32, #tpu.memory_space<vmem>>, %arg2: memref<8x72xf32, #tpu.memory_space<vmem>>, %arg3: memref<8x1xf32, #tpu.memory_space<vmem>>, %arg4: memref<2x8x384xf32, #tpu.memory_space<vmem>>) attributes {dimension_semantics = [#tpu.dimension_semantics<arbitrary>], iteration_bounds = array<i64: 1>, scalar_prefetch = 0 : i64, scratch_operands = 0 : i64, tpu.core_type = #tpu.core_type<tc>, window_params = [{pipeline_mode = #tpu.pipeline_mode<synchronous>, transform_indices = @transform_0, window_bounds = array<i64: 2, 8, 512>}, {pipeline_mode = #tpu.pipeline_mode<synchronous>, transform_indices = @transform_1, window_bounds = array<i64: 8, 72>}, {pipeline_mode = #tpu.pipeline_mode<synchronous>, transform_indices = @transform_2, window_bounds = array<i64: 8, 1>}, {pipeline_mode = #tpu.pipeline_mode<synchronous>, transform_indices = @transform_3, window_bounds = array<i64: 2, 8, 384>}]} {
    %c0 = arith.constant 0 : index
    %c0_0 = arith.constant 0 : index
    %c0_1 = arith.constant 0 : index
    %0 = vector.load %arg1[%c0, %c0_0, %c0_1] : memref<2x8x512xf32, #tpu.memory_space<vmem>>, vector<2x8x512xf32>
    %cst = arith.constant 0.000000e+00 : f32
    %1 = vector.broadcast %cst : f32 to vector<2x8x512xf32>
    %2 = arith.maximumf %0, %1 : vector<2x8x512xf32>
    %3 = vector.extract_strided_slice %2 {offsets = [0, 0, 0], sizes = [1, 8, 512], strides = [1, 1, 1]} : vector<2x8x512xf32> to vector<1x8x512xf32>
    %4 = vector.shape_cast %3 : vector<1x8x512xf32> to vector<8x512xf32>
    %5 = vector.extract_strided_slice %4 {offsets = [0, 0], sizes = [8, 384], strides = [1, 1]} : vector<8x512xf32> to vector<8x384xf32>
    %6 = vector.extract_strided_slice %4 {offsets = [0, 1], sizes = [8, 384], strides = [1, 1]} : vector<8x512xf32> to vector<8x384xf32>
    %7 = vector.extract_strided_slice %4 {offsets = [0, 2], sizes = [8, 384], strides = [1, 1]} : vector<8x512xf32> to vector<8x384xf32>
    %8 = vector.extract_strided_slice %4 {offsets = [0, 18], sizes = [8, 384], strides = [1, 1]} : vector<8x512xf32> to vector<8x384xf32>
    %9 = vector.extract_strided_slice %4 {offsets = [0, 19], sizes = [8, 384], strides = [1, 1]} : vector<8x512xf32> to vector<8x384xf32>
    %10 = vector.extract_strided_slice %4 {offsets = [0, 20], sizes = [8, 384], strides = [1, 1]} : vector<8x512xf32> to vector<8x384xf32>
    %11 = vector.extract_strided_slice %4 {offsets = [0, 36], sizes = [8, 384], strides = [1, 1]} : vector<8x512xf32> to vector<8x384xf32>
    %12 = vector.extract_strided_slice %4 {offsets = [0, 37], sizes = [8, 384], strides = [1, 1]} : vector<8x512xf32> to vector<8x384xf32>
    %13 = vector.extract_strided_slice %4 {offsets = [0, 38], sizes = [8, 384], strides = [1, 1]} : vector<8x512xf32> to vector<8x384xf32>
    %14 = tpu.concatenate %5, %6, %7, %8, %9, %10, %11, %12, %13 in 0 : vector<8x384xf32>, vector<8x384xf32>, vector<8x384xf32>, vector<8x384xf32>, vector<8x384xf32>, vector<8x384xf32>, vector<8x384xf32>, vector<8x384xf32>, vector<8x384xf32> -> vector<72x384xf32>
    %15 = vector.extract_strided_slice %2 {offsets = [1, 0, 0], sizes = [1, 8, 512], strides = [1, 1, 1]} : vector<2x8x512xf32> to vector<1x8x512xf32>
    %16 = vector.shape_cast %15 : vector<1x8x512xf32> to vector<8x512xf32>
    %17 = vector.extract_strided_slice %16 {offsets = [0, 0], sizes = [8, 384], strides = [1, 1]} : vector<8x512xf32> to vector<8x384xf32>
    %18 = vector.extract_strided_slice %16 {offsets = [0, 1], sizes = [8, 384], strides = [1, 1]} : vector<8x512xf32> to vector<8x384xf32>
    %19 = vector.extract_strided_slice %16 {offsets = [0, 2], sizes = [8, 384], strides = [1, 1]} : vector<8x512xf32> to vector<8x384xf32>
    %20 = vector.extract_strided_slice %16 {offsets = [0, 18], sizes = [8, 384], strides = [1, 1]} : vector<8x512xf32> to vector<8x384xf32>
    %21 = vector.extract_strided_slice %16 {offsets = [0, 19], sizes = [8, 384], strides = [1, 1]} : vector<8x512xf32> to vector<8x384xf32>
    %22 = vector.extract_strided_slice %16 {offsets = [0, 20], sizes = [8, 384], strides = [1, 1]} : vector<8x512xf32> to vector<8x384xf32>
    %23 = vector.extract_strided_slice %16 {offsets = [0, 36], sizes = [8, 384], strides = [1, 1]} : vector<8x512xf32> to vector<8x384xf32>
    %24 = vector.extract_strided_slice %16 {offsets = [0, 37], sizes = [8, 384], strides = [1, 1]} : vector<8x512xf32> to vector<8x384xf32>
    %25 = vector.extract_strided_slice %16 {offsets = [0, 38], sizes = [8, 384], strides = [1, 1]} : vector<8x512xf32> to vector<8x384xf32>
    %26 = tpu.concatenate %17, %18, %19, %20, %21, %22, %23, %24, %25 in 0 : vector<8x384xf32>, vector<8x384xf32>, vector<8x384xf32>, vector<8x384xf32>, vector<8x384xf32>, vector<8x384xf32>, vector<8x384xf32>, vector<8x384xf32>, vector<8x384xf32> -> vector<72x384xf32>
    %27 = tpu.concatenate %14, %26 in 1 : vector<72x384xf32>, vector<72x384xf32> -> vector<72x768xf32>
    %c0_2 = arith.constant 0 : index
    %c0_3 = arith.constant 0 : index
    %28 = vector.load %arg2[%c0_2, %c0_3] : memref<8x72xf32, #tpu.memory_space<vmem>>, vector<8x72xf32>
    %cst_4 = arith.constant dense<0.000000e+00> : vector<8x768xf32>
    %29 = tpu.matmul %28, %27, %cst_4 {dimension_numbers = #tpu.dot_dimension_numbers<[1], [0], [0], [1], [0, 0, 1, 1], [], []>} : vector<8x72xf32>, vector<72x768xf32>, vector<8x768xf32> -> vector<8x768xf32>
    %c0_5 = arith.constant 0 : index
    %c0_6 = arith.constant 0 : index
    %30 = vector.load %arg3[%c0_5, %c0_6] : memref<8x1xf32, #tpu.memory_space<vmem>>, vector<8x1xf32>
    %31 = vector.broadcast %30 : vector<8x1xf32> to vector<8x768xf32>
    %32 = arith.addf %29, %31 : vector<8x768xf32>
    %33 = vector.extract_strided_slice %32 {offsets = [0, 0], sizes = [8, 384], strides = [1, 1]} : vector<8x768xf32> to vector<8x384xf32>
    %c0_7 = arith.constant 0 : index
    %c0_8 = arith.constant 0 : index
    %c0_9 = arith.constant 0 : index
    %34 = vector.load %arg4[%c0_7, %c0_8, %c0_9] : memref<2x8x384xf32, #tpu.memory_space<vmem>>, vector<1x8x384xf32>
    %35 = vector.shape_cast %34 : vector<1x8x384xf32> to vector<8x384xf32>
    %36 = vector.shape_cast %33 : vector<8x384xf32> to vector<1x8x384xf32>
    tpu.vector_store %arg4[%c0_7, %c0_8, %c0_9], %36 {strides = array<i32>} : memref<2x8x384xf32, #tpu.memory_space<vmem>>, vector<1x8x384xf32>,
    %37 = vector.extract_strided_slice %32 {offsets = [0, 384], sizes = [8, 384], strides = [1, 1]} : vector<8x768xf32> to vector<8x384xf32>
    %c1 = arith.constant 1 : index
    %c0_10 = arith.constant 0 : index
    %c0_11 = arith.constant 0 : index
    %38 = vector.load %arg4[%c1, %c0_10, %c0_11] : memref<2x8x384xf32, #tpu.memory_space<vmem>>, vector<1x8x384xf32>
    %39 = vector.shape_cast %38 : vector<1x8x384xf32> to vector<8x384xf32>
    %40 = vector.shape_cast %37 : vector<8x384xf32> to vector<1x8x384xf32>
    tpu.vector_store %arg4[%c1, %c0_10, %c0_11], %40 {strides = array<i32>} : memref<2x8x384xf32, #tpu.memory_space<vmem>>, vector<1x8x384xf32>,
    return
  }
  func.func @transform_0(%arg0: i32) -> (i32, i32, i32) {
    %c0_i32 = arith.constant 0 : i32
    %c0_i32_0 = arith.constant 0 : i32
    %c0_i32_1 = arith.constant 0 : i32
    %c0_i32_2 = arith.constant 0 : i32
    return %c0_i32, %c0_i32_0, %c0_i32_1 : i32, i32, i32
  }
  func.func @transform_1(%arg0: i32) -> (i32, i32) {
    %c0_i32 = arith.constant 0 : i32
    %c0_i32_0 = arith.constant 0 : i32
    %c0_i32_1 = arith.constant 0 : i32
    return %c0_i32, %c0_i32_0 : i32, i32
  }
  func.func @transform_2(%arg0: i32) -> (i32, i32) {
    %c0_i32 = arith.constant 0 : i32
    %c0_i32_0 = arith.constant 0 : i32
    %c0_i32_1 = arith.constant 0 : i32
    return %c0_i32, %c0_i32_0 : i32, i32
  }
  func.func @transform_3(%arg0: i32) -> (i32, i32, i32) {
    %c0_i32 = arith.constant 0 : i32
    %c0_i32_0 = arith.constant 0 : i32
    %c0_i32_1 = arith.constant 0 : i32
    %c0_i32_2 = arith.constant 0 : i32
    return %c0_i32, %c0_i32_0, %c0_i32_1 : i32, i32, i32
  }
}

</mosaic_0001>

<llo_original>
// kernel: tpu_custom_call.1
$region0: #{tpu_custom_call.1}
  #allocation0 [shape = 'u32[]', space=smem, size = 0x4, offset = 0x4, fixed_abs, tag = 'smem constant byte address 0x4 - core index']
  #allocation1 [shape = 'u32[72,128]{1,0:T(1,128)}', space=vmem, size = 0x9000, scoped, tag = 'internal scratch']
  %s0 = inlined_call_operand.hbm [shape: f32[2,8,512], index: 0, kind: input, shape index: {}]
  %s1 = inlined_call_operand.vmem [shape: f32[8,72], index: 1, kind: input, shape index: {}]
  %s2 = inlined_call_operand.vmem [shape: f32[8,1], index: 2, kind: input, shape index: {}]
  %s3 = inlined_call_operand.hbm [shape: f32[2,8,384], index: 3, kind: output, shape index: {}]
  %s4 = sld [smem:[#allocation0]]
  $region26: #{tpu_custom_call.1} parent=0
    _
  %s6 = ssub.s32 1, %s4
  %s7 = scalar_select 0, %s6, %s4
  $region1: #{tpu_custom_call.1} parent=0
    #allocation2 [shape = 'u8[32768]{0}', space=vmem, size = 0x8000, scoped, tag = 'input window, operand 0, single buffered']
    #allocation3 [shape = 's32[1]{0}', space=sflag, size = 0x4, scoped, tag = 'scoped memory for tpu_custom_call.1']
    #allocation4 [shape = 's32[1]{0}', space=sflag, size = 0x4, scoped, tag = 'scoped memory for tpu_custom_call.1']
    #allocation5 [shape = 'u8[24576]{0}', space=vmem, size = 0x6000, scoped, tag = 'output window, operand 0, single buffered']
    %8 = vsyncpa [#allocation3], 0
    %9 = vsyncpa [#allocation4], 0
    // Predicated region
    $region2: #{tpu_custom_call.1} parent=1 // pred_check
      _
    $region3: #{tpu_custom_call.1} parent=1 // pred_check_branch
      %11 = sbr.rel (0) target = $region5
    $region4: #{tpu_custom_call.1} parent=1 // pred_region
      %13 = vsyncadd [#allocation3], 0
      %s14 = sshll.u32 %s0, 4
      %s15 = int_to_ptr.hbm [resolvable:$true] %s14
      %s16 = sshll.u32 [#allocation2], 4
      %s17 = int_to_ptr.vmem [resolvable:$true] %s16
      %22 = dma.hbm_to_vmem [thread:$0]  %s15, 1024, %s17, [#allocation3], 512, 512, 32
    $region5: #{tpu_custom_call.1} parent=1 // pred_fallthru
      _
    // Predicated region
    $region6: #{tpu_custom_call.1} parent=1 // pred_check
      _
    $region7: #{tpu_custom_call.1} parent=1 // pred_check_branch
      %24 = sbr.rel (0) target = $region9
    $region8: #{tpu_custom_call.1} parent=1 // pred_region
      _
    $region9: #{tpu_custom_call.1} parent=1 // pred_fallthru
      _
    // Predicated region
    $region10: #{tpu_custom_call.1} parent=1 // pred_check
      _
    $region11: #{tpu_custom_call.1} parent=1 // pred_check_branch
      %26 = sbr.rel (0) target = $region13
    $region12: #{tpu_custom_call.1} parent=1 // pred_region
      _
    $region13: #{tpu_custom_call.1} parent=1 // pred_fallthru
      _
    // Predicated region
    $region14: #{tpu_custom_call.1} parent=1 // pred_check
      _
    $region15: #{tpu_custom_call.1} parent=1 // pred_check_branch
      %28 = sbr.rel (0) target = $region17
    $region16: #{tpu_custom_call.1} parent=1 // pred_region
      %30 = dma.done [#allocation3], 1024
    $region17: #{tpu_custom_call.1} parent=1 // pred_fallthru
      _
    %v31 = vld [vmem:[#allocation2] sm:$0xff]
    %v32 = vld [vmem:[#allocation2 + $0x8] sm:$0xff]
    %v33 = vld [vmem:[#allocation2 + $0x10] sm:$0xff]
    %v34 = vld [vmem:[#allocation2 + $0x18] sm:$0xff]
    %v35 = vld [vmem:[#allocation2 + $0x20] sm:$0xff]
    %v36 = vld [vmem:[#allocation2 + $0x28] sm:$0xff]
    %v37 = vld [vmem:[#allocation2 + $0x30] sm:$0xff]
    %v38 = vld [vmem:[#allocation2 + $0x38] sm:$0xff]
    %v39 = vmax.f32 %v31, 0.0
    %v40 = vmax.f32 %v32, 0.0
    %v41 = vmax.f32 %v33, 0.0
    %v42 = vmax.f32 %v34, 0.0
    %v43 = vmax.f32 %v35, 0.0
    %v44 = vmax.f32 %v36, 0.0
    %v45 = vmax.f32 %v37, 0.0
    %v46 = vmax.f32 %v38, 0.0
    %51 = vrot.lane.b32.xlu0 %v39, 127
    %v52 = vpop.permute.xlu0 %51
    %53 = vrot.lane.b32.xlu0 %v40, 127
    %v54 = vpop.permute.xlu0 %53
    %55 = vrot.lane.b32.xlu0 %v41, 127
    %v56 = vpop.permute.xlu0 %55
    %57 = vrot.lane.b32.xlu0 %v42, 127
    %v58 = vpop.permute.xlu0 %57
    %vm59 = vcmask 1039360
    %v60 = vsel %vm59, %v52, %v54
    %v61 = vsel %vm59, %v54, %v56
    %v62 = vsel %vm59, %v56, %v58
    %66 = vrot.lane.b32.xlu0 %v39, 126
    %v67 = vpop.permute.xlu0 %66
    %68 = vrot.lane.b32.xlu0 %v40, 126
    %v69 = vpop.permute.xlu0 %68
    %70 = vrot.lane.b32.xlu0 %v41, 126
    %v71 = vpop.permute.xlu0 %70
    %72 = vrot.lane.b32.xlu0 %v42, 126
    %v73 = vpop.permute.xlu0 %72
    %vm74 = vcmask 1031168
    %v75 = vsel %vm74, %v67, %v69
    %v76 = vsel %vm74, %v69, %v71
    %v77 = vsel %vm74, %v71, %v73
    %81 = vrot.lane.b32.xlu0 %v39, 110
    %v82 = vpop.permute.xlu0 %81
    %83 = vrot.lane.b32.xlu0 %v40, 110
    %v84 = vpop.permute.xlu0 %83
    %85 = vrot.lane.b32.xlu0 %v41, 110
    %v86 = vpop.permute.xlu0 %85
    %87 = vrot.lane.b32.xlu0 %v42, 110
    %v88 = vpop.permute.xlu0 %87
    %vm89 = vcmask 900096
    %v90 = vsel %vm89, %v82, %v84
    %v91 = vsel %vm89, %v84, %v86
    %v92 = vsel %vm89, %v86, %v88
    %96 = vrot.lane.b32.xlu0 %v39, 109
    %v97 = vpop.permute.xlu0 %96
    %98 = vrot.lane.b32.xlu0 %v40, 109
    %v99 = vpop.permute.xlu0 %98
    %100 = vrot.lane.b32.xlu0 %v41, 109
    %v101 = vpop.permute.xlu0 %100
    %102 = vrot.lane.b32.xlu0 %v42, 109
    %v103 = vpop.permute.xlu0 %102
    %vm104 = vcmask 891904
    %v105 = vsel %vm104, %v97, %v99
    %v106 = vsel %vm104, %v99, %v101
    %v107 = vsel %vm104, %v101, %v103
    %111 = vrot.lane.b32.xlu0 %v39, 108
    %v112 = vpop.permute.xlu0 %111
    %113 = vrot.lane.b32.xlu0 %v40, 108
    %v114 = vpop.permute.xlu0 %113
    %115 = vrot.lane.b32.xlu0 %v41, 108
    %v116 = vpop.permute.xlu0 %115
    %117 = vrot.lane.b32.xlu0 %v42, 108
    %v118 = vpop.permute.xlu0 %117
    %vm119 = vcmask 883712
    %v120 = vsel %vm119, %v112, %v114
    %v121 = vsel %vm119, %v114, %v116
    %v122 = vsel %vm119, %v116, %v118
    %126 = vrot.lane.b32.xlu0 %v39, 92
    %v127 = vpop.permute.xlu0 %126
    %128 = vrot.lane.b32.xlu0 %v40, 92
    %v129 = vpop.permute.xlu0 %128
    %130 = vrot.lane.b32.xlu0 %v41, 92
    %v131 = vpop.permute.xlu0 %130
    %132 = vrot.lane.b32.xlu0 %v42, 92
    %v133 = vpop.permute.xlu0 %132
    %vm134 = vcmask 752640
    %v135 = vsel %vm134, %v127, %v129
    %v136 = vsel %vm134, %v129, %v131
    %v137 = vsel %vm134, %v131, %v133
    %141 = vrot.lane.b32.xlu0 %v39, 91
    %v142 = vpop.permute.xlu0 %141
    %143 = vrot.lane.b32.xlu0 %v40, 91
    %v144 = vpop.permute.xlu0 %143
    %145 = vrot.lane.b32.xlu0 %v41, 91
    %v146 = vpop.permute.xlu0 %145
    %147 = vrot.lane.b32.xlu0 %v42, 91
    %v148 = vpop.permute.xlu0 %147
    %vm149 = vcmask 744448
    %v150 = vsel %vm149, %v142, %v144
    %v151 = vsel %vm149, %v144, %v146
    %v152 = vsel %vm149, %v146, %v148
    %156 = vrot.lane.b32.xlu0 %v39, 90
    %v157 = vpop.permute.xlu0 %156
    %158 = vrot.lane.b32.xlu0 %v40, 90
    %v159 = vpop.permute.xlu0 %158
    %160 = vrot.lane.b32.xlu0 %v41, 90
    %v161 = vpop.permute.xlu0 %160
    %162 = vrot.lane.b32.xlu0 %v42, 90
    %v163 = vpop.permute.xlu0 %162
    %vm164 = vcmask 736256
    %v165 = vsel %vm164, %v157, %v159
    %v166 = vsel %vm164, %v159, %v161
    %v167 = vsel %vm164, %v161, %v163
    %175 = vrot.lane.b32.xlu0 %v43, 127
    %v176 = vpop.permute.xlu0 %175
    %177 = vrot.lane.b32.xlu0 %v44, 127
    %v178 = vpop.permute.xlu0 %177
    %179 = vrot.lane.b32.xlu0 %v45, 127
    %v180 = vpop.permute.xlu0 %179
    %181 = vrot.lane.b32.xlu0 %v46, 127
    %v182 = vpop.permute.xlu0 %181
    %v183 = vsel %vm59, %v176, %v178
    %v184 = vsel %vm59, %v178, %v180
    %v185 = vsel %vm59, %v180, %v182
    %189 = vrot.lane.b32.xlu0 %v43, 126
    %v190 = vpop.permute.xlu0 %189
    %191 = vrot.lane.b32.xlu0 %v44, 126
    %v192 = vpop.permute.xlu0 %191
    %193 = vrot.lane.b32.xlu0 %v45, 126
    %v194 = vpop.permute.xlu0 %193
    %195 = vrot.lane.b32.xlu0 %v46, 126
    %v196 = vpop.permute.xlu0 %195
    %v197 = vsel %vm74, %v190, %v192
    %v198 = vsel %vm74, %v192, %v194
    %v199 = vsel %vm74, %v194, %v196
    %203 = vrot.lane.b32.xlu0 %v43, 110
    %v204 = vpop.permute.xlu0 %203
    %205 = vrot.lane.b32.xlu0 %v44, 110
    %v206 = vpop.permute.xlu0 %205
    %207 = vrot.lane.b32.xlu0 %v45, 110
    %v208 = vpop.permute.xlu0 %207
    %209 = vrot.lane.b32.xlu0 %v46, 110
    %v210 = vpop.permute.xlu0 %209
    %v211 = vsel %vm89, %v204, %v206
    %v212 = vsel %vm89, %v206, %v208
    %v213 = vsel %vm89, %v208, %v210
    %217 = vrot.lane.b32.xlu0 %v43, 109
    %v218 = vpop.permute.xlu0 %217
    %219 = vrot.lane.b32.xlu0 %v44, 109
    %v220 = vpop.permute.xlu0 %219
    %221 = vrot.lane.b32.xlu0 %v45, 109
    %v222 = vpop.permute.xlu0 %221
    %223 = vrot.lane.b32.xlu0 %v46, 109
    %v224 = vpop.permute.xlu0 %223
    %v225 = vsel %vm104, %v218, %v220
    %v226 = vsel %vm104, %v220, %v222
    %v227 = vsel %vm104, %v222, %v224
    %231 = vrot.lane.b32.xlu0 %v43, 108
    %v232 = vpop.permute.xlu0 %231
    %233 = vrot.lane.b32.xlu0 %v44, 108
    %v234 = vpop.permute.xlu0 %233
    %235 = vrot.lane.b32.xlu0 %v45, 108
    %v236 = vpop.permute.xlu0 %235
    %237 = vrot.lane.b32.xlu0 %v46, 108
    %v238 = vpop.permute.xlu0 %237
    %v239 = vsel %vm119, %v232, %v234
    %v240 = vsel %vm119, %v234, %v236
    %v241 = vsel %vm119, %v236, %v238
    %245 = vrot.lane.b32.xlu0 %v43, 92
    %v246 = vpop.permute.xlu0 %245
    %247 = vrot.lane.b32.xlu0 %v44, 92
    %v248 = vpop.permute.xlu0 %247
    %249 = vrot.lane.b32.xlu0 %v45, 92
    %v250 = vpop.permute.xlu0 %249
    %251 = vrot.lane.b32.xlu0 %v46, 92
    %v252 = vpop.permute.xlu0 %251
    %v253 = vsel %vm134, %v246, %v248
    %v254 = vsel %vm134, %v248, %v250
    %v255 = vsel %vm134, %v250, %v252
    %259 = vrot.lane.b32.xlu0 %v43, 91
    %v260 = vpop.permute.xlu0 %259
    %261 = vrot.lane.b32.xlu0 %v44, 91
    %v262 = vpop.permute.xlu0 %261
    %263 = vrot.lane.b32.xlu0 %v45, 91
    %v264 = vpop.permute.xlu0 %263
    %265 = vrot.lane.b32.xlu0 %v46, 91
    %v266 = vpop.permute.xlu0 %265
    %v267 = vsel %vm149, %v260, %v262
    %v268 = vsel %vm149, %v262, %v264
    %v269 = vsel %vm149, %v264, %v266
    %273 = vrot.lane.b32.xlu0 %v43, 90
    %v274 = vpop.permute.xlu0 %273
    %275 = vrot.lane.b32.xlu0 %v44, 90
    %v276 = vpop.permute.xlu0 %275
    %277 = vrot.lane.b32.xlu0 %v45, 90
    %v278 = vpop.permute.xlu0 %277
    %279 = vrot.lane.b32.xlu0 %v46, 90
    %v280 = vpop.permute.xlu0 %279
    %v281 = vsel %vm164, %v274, %v276
    %v282 = vsel %vm164, %v276, %v278
    %v283 = vsel %vm164, %v278, %v280
    %v287 = vld [vmem:[%s1] sm:$0xff]
    %v288 = vld [vmem:[%s2] sm:$0xff]
    %290 = vset.pattern.permute.xlu0 0
    %291 = vperm.xlu0 %290, %v288
    %v292 = vpop.permute.xlu0 %291
    %vm294 = vcmask 588800
    %v296 = vsel %vm294, %v287, 0
    %298 = vmatpush.msra.mxu0 0.0
    %299 = vmatpush.msra.mxu0 0.0
    %300 = vmatpush.msra.mxu0 0.0
    %301 = vmatpush.msra.mxu0 0.0
    %302 = vmatpush.msra.mxu0 0.0
    %303 = vmatpush.msra.mxu0 0.0
    %304 = vmatpush.msra.mxu0 0.0
    %305 = vmatpush.msra.mxu0 %v165
    %306 = vmatpush.msra.mxu0 %v150
    %307 = vmatpush.msra.mxu0 %v135
    %308 = vmatpush.msra.mxu0 %v120
    %309 = vmatpush.msra.mxu0 %v105
    %310 = vmatpush.msra.mxu0 %v90
    %311 = vmatpush.msra.mxu0 %v75
    %312 = vmatpush.msra.mxu0 %v60
    %313 = vmatpush.msra.mxu0 %v39
    %314 = vmatmul.f32.gmra.mxu0 %v296
    %v315 = vpop.f32.mrf.mxu0
    %v316 = vadd.f32 %v292, %v315
    %317 = vdwg.mxu0
    %318 = vmatpush.msra.mxu0 0.0
    %319 = vmatpush.msra.mxu0 0.0
    %320 = vmatpush.msra.mxu0 0.0
    %321 = vmatpush.msra.mxu0 0.0
    %322 = vmatpush.msra.mxu0 0.0
    %323 = vmatpush.msra.mxu0 0.0
    %324 = vmatpush.msra.mxu0 0.0
    %325 = vmatpush.msra.mxu0 %v166
    %326 = vmatpush.msra.mxu0 %v151
    %327 = vmatpush.msra.mxu0 %v136
    %328 = vmatpush.msra.mxu0 %v121
    %329 = vmatpush.msra.mxu0 %v106
    %330 = vmatpush.msra.mxu0 %v91
    %331 = vmatpush.msra.mxu0 %v76
    %332 = vmatpush.msra.mxu0 %v61
    %333 = vmatpush.msra.mxu0 %v40
    %334 = vmatmul.f32.gmra.mxu0 %v296
    %v335 = vpop.f32.mrf.mxu0
    %v336 = vadd.f32 %v292, %v335
    %337 = vdwg.mxu0
    %338 = vmatpush.msra.mxu0 0.0
    %339 = vmatpush.msra.mxu0 0.0
    %340 = vmatpush.msra.mxu0 0.0
    %341 = vmatpush.msra.mxu0 0.0
    %342 = vmatpush.msra.mxu0 0.0
    %343 = vmatpush.msra.mxu0 0.0
    %344 = vmatpush.msra.mxu0 0.0
    %345 = vmatpush.msra.mxu0 %v167
    %346 = vmatpush.msra.mxu0 %v152
    %347 = vmatpush.msra.mxu0 %v137
    %348 = vmatpush.msra.mxu0 %v122
    %349 = vmatpush.msra.mxu0 %v107
    %350 = vmatpush.msra.mxu0 %v92
    %351 = vmatpush.msra.mxu0 %v77
    %352 = vmatpush.msra.mxu0 %v62
    %353 = vmatpush.msra.mxu0 %v41
    %354 = vmatmul.f32.gmra.mxu0 %v296
    %v355 = vpop.f32.mrf.mxu0
    %v356 = vadd.f32 %v292, %v355
    %357 = vdwg.mxu0
    %358 = vmatpush.msra.mxu0 0.0
    %359 = vmatpush.msra.mxu0 0.0
    %360 = vmatpush.msra.mxu0 0.0
    %361 = vmatpush.msra.mxu0 0.0
    %362 = vmatpush.msra.mxu0 0.0
    %363 = vmatpush.msra.mxu0 0.0
    %364 = vmatpush.msra.mxu0 0.0
    %365 = vmatpush.msra.mxu0 %v281
    %366 = vmatpush.msra.mxu0 %v267
    %367 = vmatpush.msra.mxu0 %v253
    %368 = vmatpush.msra.mxu0 %v239
    %369 = vmatpush.msra.mxu0 %v225
    %370 = vmatpush.msra.mxu0 %v211
    %371 = vmatpush.msra.mxu0 %v197
    %372 = vmatpush.msra.mxu0 %v183
    %373 = vmatpush.msra.mxu0 %v43
    %374 = vmatmul.f32.gmra.mxu0 %v296
    %v375 = vpop.f32.mrf.mxu0
    %v376 = vadd.f32 %v292, %v375
    %377 = vdwg.mxu0
    %378 = vmatpush.msra.mxu0 0.0
    %379 = vmatpush.msra.mxu0 0.0
    %380 = vmatpush.msra.mxu0 0.0
    %381 = vmatpush.msra.mxu0 0.0
    %382 = vmatpush.msra.mxu0 0.0
    %383 = vmatpush.msra.mxu0 0.0
    %384 = vmatpush.msra.mxu0 0.0
    %385 = vmatpush.msra.mxu0 %v282
    %386 = vmatpush.msra.mxu0 %v268
    %387 = vmatpush.msra.mxu0 %v254
    %388 = vmatpush.msra.mxu0 %v240
    %389 = vmatpush.msra.mxu0 %v226
    %390 = vmatpush.msra.mxu0 %v212
    %391 = vmatpush.msra.mxu0 %v198
    %392 = vmatpush.msra.mxu0 %v184
    %393 = vmatpush.msra.mxu0 %v44
    %394 = vmatmul.f32.gmra.mxu0 %v296
    %v395 = vpop.f32.mrf.mxu0
    %v396 = vadd.f32 %v292, %v395
    %397 = vdwg.mxu0
    %398 = vmatpush.msra.mxu0 0.0
    %399 = vmatpush.msra.mxu0 0.0
    %400 = vmatpush.msra.mxu0 0.0
    %401 = vmatpush.msra.mxu0 0.0
    %402 = vmatpush.msra.mxu0 0.0
    %403 = vmatpush.msra.mxu0 0.0
    %404 = vmatpush.msra.mxu0 0.0
    %405 = vmatpush.msra.mxu0 %v283
    %406 = vmatpush.msra.mxu0 %v269
    %407 = vmatpush.msra.mxu0 %v255
    %408 = vmatpush.msra.mxu0 %v241
    %409 = vmatpush.msra.mxu0 %v227
    %410 = vmatpush.msra.mxu0 %v213
    %411 = vmatpush.msra.mxu0 %v199
    %412 = vmatpush.msra.mxu0 %v185
    %413 = vmatpush.msra.mxu0 %v45
    %414 = vmatmul.f32.gmra.mxu0 %v296
    %v415 = vpop.f32.mrf.mxu0
    %v416 = vadd.f32 %v292, %v415
    %417 = vdwg.mxu0
    %418 = vst [vmem:[#allocation5] sm:$0xff] %v316
    %419 = vst [vmem:[#allocation5 + $0x8] sm:$0xff] %v336
    %420 = vst [vmem:[#allocation5 + $0x10] sm:$0xff] %v356
    %s421 = scalar_lea.vmem [#allocation5], 24
    %422 = vst [vmem:[%s421] sm:$0xff] %v376
    %423 = vst [vmem:[%s421 + $0x8] sm:$0xff] %v396
    %424 = vst [vmem:[%s421 + $0x10] sm:$0xff] %v416
    // Predicated region
    $region18: #{tpu_custom_call.1} parent=1 // pred_check
      _
    $region19: #{tpu_custom_call.1} parent=1 // pred_check_branch
      %426 = sbr.rel (0) target = $region21
    $region20: #{tpu_custom_call.1} parent=1 // pred_region
      %428 = vsyncadd [#allocation4], 0
      %s429 = sshll.u32 [#allocation5], 4
      %s430 = int_to_ptr.vmem [resolvable:$true] %s429
      %s431 = sshll.u32 %s3, 4
      %s432 = int_to_ptr.hbm [resolvable:$true] %s431
      %437 = dma.vmem_to_hbm [thread:$0]  %s430, 768, %s432, [#allocation4], 384, 384, 24
    $region21: #{tpu_custom_call.1} parent=1 // pred_fallthru
      _
    // Predicated region
    $region22: #{tpu_custom_call.1} parent=1 // pred_check
      _
    $region23: #{tpu_custom_call.1} parent=1 // pred_check_branch
      %439 = sbr.rel (0) target = $region25
    $region24: #{tpu_custom_call.1} parent=1 // pred_region
      %441 = dma.done [#allocation4], 768
    $region25: #{tpu_custom_call.1} parent=1 // pred_fallthru
      _
    %442 = vsyncpa [#allocation3], 1
    %443 = vsyncpa [#allocation4], 1

</llo_original>
